<compile_context>
chip_gen: v7x
topology: tpu7x:2x2x1
jax: 0.10.0
libtpu: 0.0.40
codegen_flags: <defaults>
</compile_context>

<pallas_src>
import functools

import numpy as np
import jax
import jax.numpy as jnp
from jax import lax
from jax.experimental import pallas as pl
from jax.experimental.pallas import tpu as pltpu

P_ORDER = 4      # AR order p; d = 1 (first differencing); q = 0
UNROLL = 8       # forecast steps coalesced into one slab store


def _round_up(n, m):
    return ((n + m - 1) // m) * m


def _pick_tile(total_lanes, min_tiles=1):
    """Largest tile in {256,128} dividing total_lanes, preferring >= min_tiles tiles."""
    for cand in (256, 128):
        if total_lanes % cand == 0 and total_lanes // cand >= min_tiles:
            return cand
    return 128  # total_lanes is always a multiple of 128


# --------------------------------------------------------------------------
# Fused kernel: stats + Levinson-Durbin AR(4) + unrolled recursive forecast
#   x_ref   : (S, T)        time on sublanes, series on lanes
#   out_ref : (pred_pad, T) horizon on sublanes, series on lanes
# --------------------------------------------------------------------------
def _arima_kernel(x_ref, out_ref, *, pred_pad):
    x = x_ref[...].astype(jnp.float32)               # on-vreg cast (bf16 ok)
    S = x.shape[0]
    L = S - 1                                        # differenced length

    d = x[1:, :] - x[:-1, :]                         # (L, T) first diff
    mu = jnp.mean(d, axis=0, keepdims=True)          # (1, T)
    z = d - mu                                       # centered diffs

    # autocovariances gamma_k, k = 0..p  (sublane shift + sublane reduce)
    inv_L = jnp.float32(1.0 / L)
    g = [jnp.sum(z[: L - k, :] * z[k:, :], axis=0, keepdims=True) * inv_L
         for k in range(P_ORDER + 1)]
    g0, g1, g2, g3, g4 = g
    # ridge on the diagonal (== adding ridge*I to the Toeplitz system)
    g0 = g0 + jnp.float32(1e-6) + jnp.float32(1e-4) * g0

    def _sdiv(num, den):
        den = jnp.where(jnp.abs(den) > 1e-12, den, jnp.float32(1e-12))
        return num / den

    # Levinson-Durbin recursion (p = 4), lane-vectorized VALU FMAs only.
    E = g0
    k1 = _sdiv(g1, E)
    a1 = k1
    E = E * (1.0 - k1 * k1)

    k2 = _sdiv(g2 - a1 * g1, E)
    a1, a2 = a1 - k2 * a1, k2
    E = E * (1.0 - k2 * k2)

    k3 = _sdiv(g3 - a1 * g2 - a2 * g1, E)
    a1, a2, a3 = a1 - k3 * a2, a2 - k3 * a1, k3
    E = E * (1.0 - k3 * k3)

    k4 = _sdiv(g4 - a1 * g3 - a2 * g2 - a3 * g1, E)
    a1, a2, a3, a4 = a1 - k4 * a3, a2 - k4 * a2, a3 - k4 * a1, k4

    # recursion state: last observation + last p centered diffs (row regs)
    x_prev = x[S - 1: S, :]                          # (1, T)
    z1 = z[L - 1: L, :]
    z2 = z[L - 2: L - 1, :]
    z3 = z[L - 3: L - 2, :]
    z4 = z[L - 4: L - 3, :]

    n_blocks = pred_pad // UNROLL

    def body(blk, carry):
        x_prev, z1, z2, z3, z4 = carry
        rows = []
        for _ in range(UNROLL):                      # 8 AR steps in registers
            z_next = a1 * z1 + a2 * z2 + a3 * z3 + a4 * z4
            x_next = x_prev + z_next + mu            # undo differencing
            rows.append(x_next)
            x_prev = x_next
            z1, z2, z3, z4 = z_next, z1, z2, z3
        slab = jnp.concatenate(rows, axis=0)         # (UNROLL, T)
        off = pl.multiple_of(blk * UNROLL, UNROLL)
        out_ref[pl.ds(off, UNROLL), :] = slab        # one aligned, unmasked store
        return (x_prev, z1, z2, z3, z4)

    lax.fori_loop(0, n_blocks, body, (x_prev, z1, z2, z3, z4))


# --------------------------------------------------------------------------
# Wrapper
# --------------------------------------------------------------------------
def arima_forecast(x_enc, pred_len):
    """x_enc: (B, S, C) float -> forecast (B, pred_len, C) float32."""
    B, S, C = x_enc.shape
    assert S - 1 > P_ORDER, "need seq_len - 1 > AR order"

    if x_enc.dtype not in (jnp.float32, jnp.bfloat16):
        x_enc = x_enc.astype(jnp.float32)
    in_bytes = jnp.dtype(x_enc.dtype).itemsize

    pred_pad = _round_up(pred_len, UNROLL)
    kernel = functools.partial(_arima_kernel, pred_pad=pred_pad)

    if C >= 128:
        # Direct (B, S, C) layout: no wrapper-side transpose HBM round trip.
        Cp = _round_up(C, 128)
        x = x_enc if Cp == C else jnp.pad(x_enc, ((0, 0), (0, 0), (0, Cp - C)))
        tile = _pick_tile(Cp, min_tiles=2 if B == 1 else 1)
        grid = (B, Cp // tile)
        cost = pl.CostEstimate(
            flops=int((13 * S + 10 * pred_pad) * B * Cp),
            transcendentals=0,
            bytes_accessed=int(B * Cp * (S * in_bytes + pred_pad * 4)))
        out = pl.pallas_call(
            kernel,
            grid=grid,
            in_specs=[pl.BlockSpec((None, S, tile), lambda b, c: (b, 0, c))],
            out_specs=pl.BlockSpec((None, pred_pad, tile), lambda b, c: (b, 0, c)),
            out_shape=jax.ShapeDtypeStruct((B, pred_pad, Cp), jnp.float32),
            compiler_params=pltpu.CompilerParams(
                dimension_semantics=("parallel", "parallel")),
            cost_estimate=cost,
        )(x)
        return out[:, :pred_len, :C]

    # Small C: series-on-lanes layout, column n = b*C + c is one series.
    N = B * C
    x = jnp.transpose(x_enc, (1, 0, 2)).reshape(S, N)
    TN = _round_up(N, 128)                 # pad only to 128 lanes (no over-pad)
    if TN != N:
        x = jnp.pad(x, ((0, 0), (0, TN - N)))
    tile = _pick_tile(TN, min_tiles=2)     # >=2 tiles when possible (v7x 2 TCs)
    grid = (TN // tile,)
    cost = pl.CostEstimate(
        flops=int((13 * S + 10 * pred_pad) * TN),
        transcendentals=0,
        bytes_accessed=int(TN * (S * in_bytes + pred_pad * 4)))
    preds = pl.pallas_call(
        kernel,
        grid=grid,
        in_specs=[pl.BlockSpec((S, tile), lambda i: (0, i))],
        out_specs=pl.BlockSpec((pred_pad, tile), lambda i: (0, i)),
        out_shape=jax.ShapeDtypeStruct((pred_pad, TN), jnp.float32),
        compiler_params=pltpu.CompilerParams(
            dimension_semantics=("parallel",)),
        cost_estimate=cost,
    )(x)
    preds = preds[:pred_len, :N].reshape(pred_len, B, C)    # (pred_len, B, C)
    return jnp.transpose(preds, (1, 0, 2))                  # (B, pred_len, C)


class Model:
    """JAX/Pallas analog of the PyTorch ARIMA wrapper `Model`."""

    def __init__(self, configs):
        self.task_name = configs["task_name"]
        self.seq_len = configs["seq_len"]
        self.label_len = configs["label_len"]
        self.pred_len = configs["pred_len"]
        self._forecast = jax.jit(
            functools.partial(arima_forecast, pred_len=self.pred_len))

    def forward(self, x_enc, x_mark_enc, x_dec, x_mark_dec, mask=None):
        if "forecast" in self.task_name:
            dec_out = self._forecast(x_enc)             # (B, pred_len, C)
            return dec_out[:, -self.pred_len:, :]
        raise NotImplementedError

    __call__ = forward


# --------------------------------------------------------------------------
# Pure-numpy reference of the *same* AR(4,1,0) math (internal consistency)
# --------------------------------------------------------------------------
def _arima_ref_1d(x, pred_len):
    x = np.asarray(x, np.float64)
    d = x[1:] - x[:-1]
    L = d.shape[0]
    mu = d.mean()
    z = d - mu
    g = [(z[:L - k] * z[k:]).sum() / L for k in range(P_ORDER + 1)]
    g0 = g[0] + 1e-6 + 1e-4 * g[0]

    def sdiv(n, den):
        return n / (den if abs(den) > 1e-12 else 1e-12)

    E = g0
    k1 = sdiv(g[1], E); a1 = k1; E *= (1 - k1 * k1)
    k2 = sdiv(g[2] - a1 * g[1], E)
    a1, a2 = a1 - k2 * a1, k2
    E *= (1 - k2 * k2)
    k3 = sdiv(g[3] - a1 * g[2] - a2 * g[1], E)
    a1, a2, a3 = a1 - k3 * a2, a2 - k3 * a1, k3
    E *= (1 - k3 * k3)
    k4 = sdiv(g[4] - a1 * g[3] - a2 * g[2] - a3 * g[1], E)
    a1, a2, a3, a4 = a1 - k4 * a3, a2 - k4 * a2, a3 - k4 * a1, k4

    zp = [z[L - 1], z[L - 2], z[L - 3], z[L - 4]]
    xp = x[-1]
    out = []
    for _ in range(pred_len):
        zn = a1 * zp[0] + a2 * zp[1] + a3 * zp[2] + a4 * zp[3]
        xp = xp + zn + mu
        out.append(xp)
        zp = [zn, zp[0], zp[1], zp[2]]
    return np.array(out)


if __name__ == "__main__":
    configs = {
        "task_name": "long_term_forecast",
        "seq_len": 16,
        "label_len": 4,
        "pred_len": 8,
    }
    B, S, C = 2, configs["seq_len"], 4

    key = jax.random.PRNGKey(0)
    k1, k2, k3, k4 = jax.random.split(key, 4)
    x_enc = jax.random.normal(k1, (B, S, C), dtype=jnp.float32)
    x_mark_enc = jax.random.normal(k2, (B, S, 4), dtype=jnp.float32)
    x_dec = jax.random.normal(
        k3, (B, configs["label_len"] + configs["pred_len"], C), dtype=jnp.float32)
    x_mark_dec = jax.random.normal(
        k4, (B, configs["label_len"] + configs["pred_len"], 4), dtype=jnp.float32)

    model = Model(configs)
    out = model(x_enc, x_mark_enc, x_dec, x_mark_dec)
    out = jax.block_until_ready(out)

    assert out.shape == (B, configs["pred_len"], C), out.shape
    assert out.dtype == jnp.float32
    assert bool(jnp.all(jnp.isfinite(out)))

    # Internal-consistency check: kernel vs same AR(4,1,0) math in float64.
    x_np = np.asarray(x_enc)
    ref = np.stack(
        [np.stack([_arima_ref_1d(x_np[b, :, c], configs["pred_len"])
                   for c in range(C)], axis=-1) for b in range(B)], axis=0)
    np.testing.assert_allclose(np.asarray(out), ref, rtol=2e-3, atol=2e-3)

    # Exercise the direct (no-transpose) C >= 128 path, with bf16 pass-through.
    xl = jax.random.normal(jax.random.PRNGKey(1), (1, S, 128), dtype=jnp.bfloat16)
    out_l = jax.block_until_ready(arima_forecast(xl, configs["pred_len"]))
    assert out_l.shape == (1, configs["pred_len"], 128), out_l.shape
    assert bool(jnp.all(jnp.isfinite(out_l)))

    print("KERNEL_OK")
</pallas_src>

<mosaic_0001>
module attributes {stable_mosaic.version = 11 : i64} {
  func.func @_arima_kernel(%arg0: i32, %arg1: memref<16x128xf32, #tpu.memory_space<vmem>>, %arg2: memref<8x128xf32, #tpu.memory_space<vmem>>) attributes {dimension_semantics = [#tpu.dimension_semantics<parallel>], iteration_bounds = array<i64: 1>, scalar_prefetch = 0 : i64, scratch_operands = 0 : i64, tpu.core_type = #tpu.core_type<tc>, window_params = [{transform_indices = @transform_0, window_bounds = array<i64: 16, 128>}, {transform_indices = @transform_1, window_bounds = array<i64: 8, 128>}]} {
    %c0 = arith.constant 0 : index
    %c0_0 = arith.constant 0 : index
    %0 = vector.load %arg1[%c0, %c0_0] : memref<16x128xf32, #tpu.memory_space<vmem>>, vector<16x128xf32>
    %1 = vector.extract_strided_slice %0 {offsets = [1, 0], sizes = [15, 128], strides = [1, 1]} : vector<16x128xf32> to vector<15x128xf32>
    %2 = vector.extract_strided_slice %0 {offsets = [0, 0], sizes = [15, 128], strides = [1, 1]} : vector<16x128xf32> to vector<15x128xf32>
    %3 = arith.subf %1, %2 : vector<15x128xf32>
    %cst = arith.constant dense<0.000000e+00> : vector<128xf32>
    %4 = vector.multi_reduction <add>, %3, %cst [0] : vector<15x128xf32> to vector<128xf32>
    %5 = vector.shape_cast %4 : vector<128xf32> to vector<1x128xf32>
    %cst_1 = arith.constant 1.500000e+01 : f32
    %6 = vector.broadcast %cst_1 : f32 to vector<1x128xf32>
    %7 = arith.divf %5, %6 : vector<1x128xf32>
    %8 = vector.broadcast %7 : vector<1x128xf32> to vector<15x128xf32>
    %9 = arith.subf %3, %8 : vector<15x128xf32>
    %10 = arith.mulf %9, %9 : vector<15x128xf32>
    %cst_2 = arith.constant dense<0.000000e+00> : vector<128xf32>
    %11 = vector.multi_reduction <add>, %10, %cst_2 [0] : vector<15x128xf32> to vector<128xf32>
    %12 = vector.shape_cast %11 : vector<128xf32> to vector<1x128xf32>
    %cst_3 = arith.constant 0.0666666701 : f32
    %13 = vector.broadcast %cst_3 : f32 to vector<1x128xf32>
    %14 = arith.mulf %12, %13 : vector<1x128xf32>
    %15 = vector.extract_strided_slice %9 {offsets = [0, 0], sizes = [14, 128], strides = [1, 1]} : vector<15x128xf32> to vector<14x128xf32>
    %16 = vector.extract_strided_slice %9 {offsets = [1, 0], sizes = [14, 128], strides = [1, 1]} : vector<15x128xf32> to vector<14x128xf32>
    %17 = arith.mulf %15, %16 : vector<14x128xf32>
    %cst_4 = arith.constant dense<0.000000e+00> : vector<128xf32>
    %18 = vector.multi_reduction <add>, %17, %cst_4 [0] : vector<14x128xf32> to vector<128xf32>
    %19 = vector.shape_cast %18 : vector<128xf32> to vector<1x128xf32>
    %cst_5 = arith.constant 0.0666666701 : f32
    %20 = vector.broadcast %cst_5 : f32 to vector<1x128xf32>
    %21 = arith.mulf %19, %20 : vector<1x128xf32>
    %22 = vector.extract_strided_slice %9 {offsets = [0, 0], sizes = [13, 128], strides = [1, 1]} : vector<15x128xf32> to vector<13x128xf32>
    %23 = vector.extract_strided_slice %9 {offsets = [2, 0], sizes = [13, 128], strides = [1, 1]} : vector<15x128xf32> to vector<13x128xf32>
    %24 = arith.mulf %22, %23 : vector<13x128xf32>
    %cst_6 = arith.constant dense<0.000000e+00> : vector<128xf32>
    %25 = vector.multi_reduction <add>, %24, %cst_6 [0] : vector<13x128xf32> to vector<128xf32>
    %26 = vector.shape_cast %25 : vector<128xf32> to vector<1x128xf32>
    %cst_7 = arith.constant 0.0666666701 : f32
    %27 = vector.broadcast %cst_7 : f32 to vector<1x128xf32>
    %28 = arith.mulf %26, %27 : vector<1x128xf32>
    %29 = vector.extract_strided_slice %9 {offsets = [0, 0], sizes = [12, 128], strides = [1, 1]} : vector<15x128xf32> to vector<12x128xf32>
    %30 = vector.extract_strided_slice %9 {offsets = [3, 0], sizes = [12, 128], strides = [1, 1]} : vector<15x128xf32> to vector<12x128xf32>
    %31 = arith.mulf %29, %30 : vector<12x128xf32>
    %cst_8 = arith.constant dense<0.000000e+00> : vector<128xf32>
    %32 = vector.multi_reduction <add>, %31, %cst_8 [0] : vector<12x128xf32> to vector<128xf32>
    %33 = vector.shape_cast %32 : vector<128xf32> to vector<1x128xf32>
    %cst_9 = arith.constant 0.0666666701 : f32
    %34 = vector.broadcast %cst_9 : f32 to vector<1x128xf32>
    %35 = arith.mulf %33, %34 : vector<1x128xf32>
    %36 = vector.extract_strided_slice %9 {offsets = [0, 0], sizes = [11, 128], strides = [1, 1]} : vector<15x128xf32> to vector<11x128xf32>
    %37 = vector.extract_strided_slice %9 {offsets = [4, 0], sizes = [11, 128], strides = [1, 1]} : vector<15x128xf32> to vector<11x128xf32>
    %38 = arith.mulf %36, %37 : vector<11x128xf32>
    %cst_10 = arith.constant dense<0.000000e+00> : vector<128xf32>
    %39 = vector.multi_reduction <add>, %38, %cst_10 [0] : vector<11x128xf32> to vector<128xf32>
    %40 = vector.shape_cast %39 : vector<128xf32> to vector<1x128xf32>
    %cst_11 = arith.constant 0.0666666701 : f32
    %41 = vector.broadcast %cst_11 : f32 to vector<1x128xf32>
    %42 = arith.mulf %40, %41 : vector<1x128xf32>
    %cst_12 = arith.constant 9.99999997E-7 : f32
    %43 = vector.broadcast %cst_12 : f32 to vector<1x128xf32>
    %44 = arith.addf %14, %43 : vector<1x128xf32>
    %cst_13 = arith.constant 9.99999974E-5 : f32
    %45 = vector.broadcast %cst_13 : f32 to vector<1x128xf32>
    %46 = arith.mulf %45, %14 : vector<1x128xf32>
    %47 = arith.addf %44, %46 : vector<1x128xf32>
    %48 = math.absf %47 : vector<1x128xf32>
    %cst_14 = arith.constant 9.99999996E-13 : f32
    %49 = vector.broadcast %cst_14 : f32 to vector<1x128xf32>
    %50 = arith.cmpf ogt, %48, %49 : vector<1x128xf32>
    %cst_15 = arith.constant 9.99999996E-13 : f32
    %51 = vector.broadcast %cst_15 : f32 to vector<1x128xf32>
    %52 = arith.select %50, %47, %51 : vector<1x128xi1>, vector<1x128xf32>
    %53 = arith.divf %21, %52 : vector<1x128xf32>
    %54 = arith.mulf %53, %53 : vector<1x128xf32>
    %cst_16 = arith.constant 1.000000e+00 : f32
    %55 = vector.broadcast %cst_16 : f32 to vector<1x128xf32>
    %56 = arith.subf %55, %54 : vector<1x128xf32>
    %57 = arith.mulf %47, %56 : vector<1x128xf32>
    %58 = arith.mulf %53, %21 : vector<1x128xf32>
    %59 = arith.subf %28, %58 : vector<1x128xf32>
    %60 = math.absf %57 : vector<1x128xf32>
    %cst_17 = arith.constant 9.99999996E-13 : f32
    %61 = vector.broadcast %cst_17 : f32 to vector<1x128xf32>
    %62 = arith.cmpf ogt, %60, %61 : vector<1x128xf32>
    %cst_18 = arith.constant 9.99999996E-13 : f32
    %63 = vector.broadcast %cst_18 : f32 to vector<1x128xf32>
    %64 = arith.select %62, %57, %63 : vector<1x128xi1>, vector<1x128xf32>
    %65 = arith.divf %59, %64 : vector<1x128xf32>
    %66 = arith.mulf %65, %53 : vector<1x128xf32>
    %67 = arith.subf %53, %66 : vector<1x128xf32>
    %68 = arith.mulf %65, %65 : vector<1x128xf32>
    %cst_19 = arith.constant 1.000000e+00 : f32
    %69 = vector.broadcast %cst_19 : f32 to vector<1x128xf32>
    %70 = arith.subf %69, %68 : vector<1x128xf32>
    %71 = arith.mulf %57, %70 : vector<1x128xf32>
    %72 = arith.mulf %67, %28 : vector<1x128xf32>
    %73 = arith.subf %35, %72 : vector<1x128xf32>
    %74 = arith.mulf %65, %21 : vector<1x128xf32>
    %75 = arith.subf %73, %74 : vector<1x128xf32>
    %76 = math.absf %71 : vector<1x128xf32>
    %cst_20 = arith.constant 9.99999996E-13 : f32
    %77 = vector.broadcast %cst_20 : f32 to vector<1x128xf32>
    %78 = arith.cmpf ogt, %76, %77 : vector<1x128xf32>
    %cst_21 = arith.constant 9.99999996E-13 : f32
    %79 = vector.broadcast %cst_21 : f32 to vector<1x128xf32>
    %80 = arith.select %78, %71, %79 : vector<1x128xi1>, vector<1x128xf32>
    %81 = arith.divf %75, %80 : vector<1x128xf32>
    %82 = arith.mulf %81, %65 : vector<1x128xf32>
    %83 = arith.subf %67, %82 : vector<1x128xf32>
    %84 = arith.mulf %81, %67 : vector<1x128xf32>
    %85 = arith.subf %65, %84 : vector<1x128xf32>
    %86 = arith.mulf %81, %81 : vector<1x128xf32>
    %cst_22 = arith.constant 1.000000e+00 : f32
    %87 = vector.broadcast %cst_22 : f32 to vector<1x128xf32>
    %88 = arith.subf %87, %86 : vector<1x128xf32>
    %89 = arith.mulf %71, %88 : vector<1x128xf32>
    %90 = arith.mulf %83, %35 : vector<1x128xf32>
    %91 = arith.subf %42, %90 : vector<1x128xf32>
    %92 = arith.mulf %85, %28 : vector<1x128xf32>
    %93 = arith.subf %91, %92 : vector<1x128xf32>
    %94 = arith.mulf %81, %21 : vector<1x128xf32>
    %95 = arith.subf %93, %94 : vector<1x128xf32>
    %96 = math.absf %89 : vector<1x128xf32>
    %cst_23 = arith.constant 9.99999996E-13 : f32
    %97 = vector.broadcast %cst_23 : f32 to vector<1x128xf32>
    %98 = arith.cmpf ogt, %96, %97 : vector<1x128xf32>
    %cst_24 = arith.constant 9.99999996E-13 : f32
    %99 = vector.broadcast %cst_24 : f32 to vector<1x128xf32>
    %100 = arith.select %98, %89, %99 : vector<1x128xi1>, vector<1x128xf32>
    %101 = arith.divf %95, %100 : vector<1x128xf32>
    %102 = arith.mulf %101, %81 : vector<1x128xf32>
    %103 = arith.subf %83, %102 : vector<1x128xf32>
    %104 = arith.mulf %101, %85 : vector<1x128xf32>
    %105 = arith.subf %85, %104 : vector<1x128xf32>
    %106 = arith.mulf %101, %83 : vector<1x128xf32>
    %107 = arith.subf %81, %106 : vector<1x128xf32>
    %108 = vector.extract_strided_slice %0 {offsets = [15, 0], sizes = [1, 128], strides = [1, 1]} : vector<16x128xf32> to vector<1x128xf32>
    %109 = vector.extract_strided_slice %9 {offsets = [14, 0], sizes = [1, 128], strides = [1, 1]} : vector<15x128xf32> to vector<1x128xf32>
    %110 = vector.extract_strided_slice %9 {offsets = [13, 0], sizes = [1, 128], strides = [1, 1]} : vector<15x128xf32> to vector<1x128xf32>
    %111 = vector.extract_strided_slice %9 {offsets = [12, 0], sizes = [1, 128], strides = [1, 1]} : vector<15x128xf32> to vector<1x128xf32>
    %112 = vector.extract_strided_slice %9 {offsets = [11, 0], sizes = [1, 128], strides = [1, 1]} : vector<15x128xf32> to vector<1x128xf32>
    %c0_i32 = arith.constant 0 : i32
    %113 = arith.mulf %103, %109 : vector<1x128xf32>
    %114 = arith.mulf %105, %110 : vector<1x128xf32>
    %115 = arith.addf %113, %114 : vector<1x128xf32>
    %116 = arith.mulf %107, %111 : vector<1x128xf32>
    %117 = arith.addf %115, %116 : vector<1x128xf32>
    %118 = arith.mulf %101, %112 : vector<1x128xf32>
    %119 = arith.addf %117, %118 : vector<1x128xf32>
    %120 = arith.addf %108, %119 : vector<1x128xf32>
    %121 = arith.addf %120, %7 : vector<1x128xf32>
    %122 = arith.mulf %103, %119 : vector<1x128xf32>
    %123 = arith.mulf %105, %109 : vector<1x128xf32>
    %124 = arith.addf %122, %123 : vector<1x128xf32>
    %125 = arith.mulf %107, %110 : vector<1x128xf32>
    %126 = arith.addf %124, %125 : vector<1x128xf32>
    %127 = arith.mulf %101, %111 : vector<1x128xf32>
    %128 = arith.addf %126, %127 : vector<1x128xf32>
    %129 = arith.addf %121, %128 : vector<1x128xf32>
    %130 = arith.addf %129, %7 : vector<1x128xf32>
    %131 = arith.mulf %103, %128 : vector<1x128xf32>
    %132 = arith.mulf %105, %119 : vector<1x128xf32>
    %133 = arith.addf %131, %132 : vector<1x128xf32>
    %134 = arith.mulf %107, %109 : vector<1x128xf32>
    %135 = arith.addf %133, %134 : vector<1x128xf32>
    %136 = arith.mulf %101, %110 : vector<1x128xf32>
    %137 = arith.addf %135, %136 : vector<1x128xf32>
    %138 = arith.addf %130, %137 : vector<1x128xf32>
    %139 = arith.addf %138, %7 : vector<1x128xf32>
    %140 = arith.mulf %103, %137 : vector<1x128xf32>
    %141 = arith.mulf %105, %128 : vector<1x128xf32>
    %142 = arith.addf %140, %141 : vector<1x128xf32>
    %143 = arith.mulf %107, %119 : vector<1x128xf32>
    %144 = arith.addf %142, %143 : vector<1x128xf32>
    %145 = arith.mulf %101, %109 : vector<1x128xf32>
    %146 = arith.addf %144, %145 : vector<1x128xf32>
    %147 = arith.addf %139, %146 : vector<1x128xf32>
    %148 = arith.addf %147, %7 : vector<1x128xf32>
    %149 = arith.mulf %103, %146 : vector<1x128xf32>
    %150 = arith.mulf %105, %137 : vector<1x128xf32>
    %151 = arith.addf %149, %150 : vector<1x128xf32>
    %152 = arith.mulf %107, %128 : vector<1x128xf32>
    %153 = arith.addf %151, %152 : vector<1x128xf32>
    %154 = arith.mulf %101, %119 : vector<1x128xf32>
    %155 = arith.addf %153, %154 : vector<1x128xf32>
    %156 = arith.addf %148, %155 : vector<1x128xf32>
    %157 = arith.addf %156, %7 : vector<1x128xf32>
    %158 = arith.mulf %103, %155 : vector<1x128xf32>
    %159 = arith.mulf %105, %146 : vector<1x128xf32>
    %160 = arith.addf %158, %159 : vector<1x128xf32>
    %161 = arith.mulf %107, %137 : vector<1x128xf32>
    %162 = arith.addf %160, %161 : vector<1x128xf32>
    %163 = arith.mulf %101, %128 : vector<1x128xf32>
    %164 = arith.addf %162, %163 : vector<1x128xf32>
    %165 = arith.addf %157, %164 : vector<1x128xf32>
    %166 = arith.addf %165, %7 : vector<1x128xf32>
    %167 = arith.mulf %103, %164 : vector<1x128xf32>
    %168 = arith.mulf %105, %155 : vector<1x128xf32>
    %169 = arith.addf %167, %168 : vector<1x128xf32>
    %170 = arith.mulf %107, %146 : vector<1x128xf32>
    %171 = arith.addf %169, %170 : vector<1x128xf32>
    %172 = arith.mulf %101, %137 : vector<1x128xf32>
    %173 = arith.addf %171, %172 : vector<1x128xf32>
    %174 = arith.addf %166, %173 : vector<1x128xf32>
    %175 = arith.addf %174, %7 : vector<1x128xf32>
    %176 = arith.mulf %103, %173 : vector<1x128xf32>
    %177 = arith.mulf %105, %164 : vector<1x128xf32>
    %178 = arith.addf %176, %177 : vector<1x128xf32>
    %179 = arith.mulf %107, %155 : vector<1x128xf32>
    %180 = arith.addf %178, %179 : vector<1x128xf32>
    %181 = arith.mulf %101, %146 : vector<1x128xf32>
    %182 = arith.addf %180, %181 : vector<1x128xf32>
    %183 = arith.addf %175, %182 : vector<1x128xf32>
    %184 = arith.addf %183, %7 : vector<1x128xf32>
    %185 = tpu.concatenate %121, %130, %139, %148, %157, %166, %175, %184 in 0 : vector<1x128xf32>, vector<1x128xf32>, vector<1x128xf32>, vector<1x128xf32>, vector<1x128xf32>, vector<1x128xf32>, vector<1x128xf32>, vector<1x128xf32> -> vector<8x128xf32>
    %c8_i32 = arith.constant 8 : i32
    %186 = arith.muli %c0_i32, %c8_i32 : i32
    %187 = tpu.assume_multiple %186, 8 : i32
    %188 = arith.index_cast %187 : i32 to index
    %c0_25 = arith.constant 0 : index
    %189 = vector.load %arg2[%188, %c0_25] : memref<8x128xf32, #tpu.memory_space<vmem>>, vector<8x128xf32>
    tpu.vector_store %arg2[%188, %c0_25], %185 {strides = array<i32>} : memref<8x128xf32, #tpu.memory_space<vmem>>, vector<8x128xf32>,
    %c1_i32 = arith.constant 1 : i32
    return
  }
  func.func @transform_0(%arg0: i32) -> (i32, i32) {
    %c0_i32 = arith.constant 0 : i32
    %c0_i32_0 = arith.constant 0 : i32
    return %c0_i32, %arg0 : i32, i32
  }
  func.func @transform_1(%arg0: i32) -> (i32, i32) {
    %c0_i32 = arith.constant 0 : i32
    %c0_i32_0 = arith.constant 0 : i32
    return %c0_i32, %arg0 : i32, i32
  }
}

</mosaic_0001>

<llo_original>
// kernel: arima_forecast.1
$region0: #{arima_forecast.1}
  #allocation0 [shape = 'u32[]', space=smem, size = 0x4, offset = 0x4, fixed_abs, tag = 'smem constant byte address 0x4 - core index']
  #allocation1 [shape = 'u32[144,128]{1,0:T(1,128)}', space=vmem, size = 0x12000, scoped, tag = 'internal scratch']
  %s0 = inlined_call_operand.vmem [shape: f32[16,128], index: 0, kind: input, shape index: {}]
  %s1 = inlined_call_operand.vmem [shape: f32[8,128], index: 1, kind: output, shape index: {}]
  %s2 = sld [smem:[#allocation0]]
  $region14: #{arima_forecast.1} parent=0
    _
  %s4 = ssub.s32 1, %s2
  %s5 = scalar_select 0, %s4, %s2
  // Predicated region
  $region2: #{arima_forecast.1} parent=0 // pred_check
    _
  $region3: #{arima_forecast.1} parent=0 // pred_check_branch
    %7 = sbr.rel (0) target = $region5
  $region4: #{arima_forecast.1} parent=0 // pred_region
    _
  $region5: #{arima_forecast.1} parent=0 // pred_fallthru
    _
  %v8 = vld [vmem:[%s0] sm:$0xff]
  %v9 = vld [vmem:[%s0 + $0x8] sm:$0xff]
  %vm12 = vcmask 1040384
  %v13 = vrot.slane %v8, 7
  %v14 = vrot.slane %v9, 7
  %v15 = vsel %vm12, %v13, %v14
  %v18 = vsub.f32 %v8, %v13
  %v19 = vsub.f32 %v9, %v15
  %vm22 = vcmask 1046528
  %v23 = vrot.slane %v18, 1
  %v24 = vrot.slane %v19, 1
  %v25 = vsel %vm22, %v23, %v24
  %v28 = vsel %vm22, %v24, 0.0
  %v29 = vadd.f32 %v25, %v28
  %v30 = vrot.slane %v29, 4
  %v31 = vadd.f32 %v29, %v30
  %v32 = vrot.slane %v31, 2
  %v33 = vadd.f32 %v31, %v32
  %v34 = vrot.slane %v33, 1
  %v35 = vadd.f32 %v33, %v34
  %v36 = vrcp.pop 15.0
  %v37 = vmul.f32 %v35, %v36
  %v38 = vsub.f32 %v18, %v37
  %v39 = vsub.f32 %v19, %v37
  %v40 = vmul.f32 %v38, %v38
  %v41 = vmul.f32 %v39, %v39
  %v44 = vrot.slane %v40, 1
  %v45 = vrot.slane %v41, 1
  %v46 = vsel %vm22, %v44, %v45
  %v49 = vsel %vm22, %v45, 0.0
  %v50 = vadd.f32 %v46, %v49
  %v51 = vrot.slane %v50, 4
  %v52 = vadd.f32 %v50, %v51
  %v53 = vrot.slane %v52, 2
  %v54 = vadd.f32 %v52, %v53
  %v55 = vrot.slane %v54, 1
  %v56 = vadd.f32 %v54, %v55
  %v57 = vmul.f32 %v56, 0.06666667
  %v60 = vrot.slane %v38, 1
  %v61 = vrot.slane %v39, 1
  %v62 = vsel %vm22, %v60, %v61
  %v65 = vmul.f32 %v38, %v62
  %v66 = vmul.f32 %v39, %v61
  %v69 = vrot.slane %v65, 1
  %v70 = vrot.slane %v66, 1
  %v71 = vsel %vm22, %v69, %v70
  %vm74 = vcmask 1045504
  %v75 = vsel %vm74, %v70, 0.0
  %v76 = vadd.f32 %v71, %v75
  %v77 = vrot.slane %v76, 4
  %v78 = vadd.f32 %v76, %v77
  %v79 = vrot.slane %v78, 2
  %v80 = vadd.f32 %v78, %v79
  %v81 = vrot.slane %v80, 1
  %v82 = vadd.f32 %v80, %v81
  %v83 = vmul.f32 %v82, 0.06666667
  %v84 = vrot.slane %v38, 2
  %v85 = vrot.slane %v39, 2
  %v86 = vsel %vm74, %v84, %v85
  %v89 = vmul.f32 %v38, %v86
  %v90 = vmul.f32 %v39, %v85
  %v93 = vrot.slane %v89, 1
  %v94 = vrot.slane %v90, 1
  %v95 = vsel %vm22, %v93, %v94
  %vm98 = vcmask 1044480
  %v99 = vsel %vm98, %v94, 0.0
  %v100 = vadd.f32 %v95, %v99
  %v101 = vrot.slane %v100, 4
  %v102 = vadd.f32 %v100, %v101
  %v103 = vrot.slane %v102, 2
  %v104 = vadd.f32 %v102, %v103
  %v105 = vrot.slane %v104, 1
  %v106 = vadd.f32 %v104, %v105
  %v107 = vmul.f32 %v106, 0.06666667
  %v108 = vrot.slane %v38, 3
  %v109 = vrot.slane %v39, 3
  %v110 = vsel %vm98, %v108, %v109
  %v113 = vmul.f32 %v38, %v110
  %v114 = vmul.f32 %v39, %v109
  %v117 = vrot.slane %v113, 1
  %v118 = vrot.slane %v114, 1
  %v119 = vsel %vm22, %v117, %v118
  %vm122 = vcmask 1043456
  %v123 = vsel %vm122, %v118, 0.0
  %v124 = vadd.f32 %v119, %v123
  %v125 = vrot.slane %v124, 4
  %v126 = vadd.f32 %v124, %v125
  %v127 = vrot.slane %v126, 2
  %v128 = vadd.f32 %v126, %v127
  %v129 = vrot.slane %v128, 1
  %v130 = vadd.f32 %v128, %v129
  %v131 = vmul.f32 %v130, 0.06666667
  %v132 = vrot.slane %v38, 4
  %v133 = vrot.slane %v39, 4
  %v134 = vsel %vm122, %v132, %v133
  %v137 = vmul.f32 %v38, %v134
  %v138 = vmul.f32 %v39, %v133
  %v141 = vrot.slane %v137, 1
  %v142 = vrot.slane %v138, 1
  %v143 = vsel %vm22, %v141, %v142
  %vm146 = vcmask 1042432
  %v147 = vsel %vm146, %v142, 0.0
  %v148 = vadd.f32 %v143, %v147
  %v149 = vrot.slane %v148, 4
  %v150 = vadd.f32 %v148, %v149
  %v151 = vrot.slane %v150, 2
  %v152 = vadd.f32 %v150, %v151
  %v153 = vrot.slane %v152, 1
  %v154 = vadd.f32 %v152, %v153
  %v155 = vmul.f32 %v154, 0.06666667
  %v156 = vadd.f32 %v57, 1e-06
  %v157 = vmul.f32 %v57, 0.0001
  %v158 = vadd.f32 %v156, %v157
  %v159 = vand.u32 2147483647, %v158
  %vm160 = vcmp.gt.f32.partialorder %v159, 1e-12
  %v161 = vsel %vm160, %v158, 1e-12
  %v162 = vrcp.pop %v161
  %v163 = vmul.f32 %v83, %v162
  %v164 = vmul.f32 %v163, %v163
  %v165 = vsub.f32 1.0, %v164
  %v166 = vmul.f32 %v158, %v165
  %v167 = vmul.f32 %v163, %v83
  %v168 = vsub.f32 %v107, %v167
  %v169 = vand.u32 2147483647, %v166
  %vm170 = vcmp.gt.f32.partialorder %v169, 1e-12
  %v171 = vsel %vm170, %v166, 1e-12
  %v172 = vrcp.pop %v171
  %v173 = vmul.f32 %v168, %v172
  %v174 = vmul.f32 %v173, %v163
  %v175 = vsub.f32 %v163, %v174
  %v176 = vmul.f32 %v173, %v173
  %v177 = vsub.f32 1.0, %v176
  %v178 = vmul.f32 %v166, %v177
  %v179 = vmul.f32 %v175, %v107
  %v180 = vsub.f32 %v131, %v179
  %v181 = vmul.f32 %v173, %v83
  %v182 = vsub.f32 %v180, %v181
  %v183 = vand.u32 2147483647, %v178
  %vm184 = vcmp.gt.f32.partialorder %v183, 1e-12
  %v185 = vsel %vm184, %v178, 1e-12
  %v186 = vrcp.pop %v185
  %v187 = vmul.f32 %v182, %v186
  %v188 = vmul.f32 %v187, %v173
  %v189 = vsub.f32 %v175, %v188
  %v190 = vmul.f32 %v187, %v175
  %v191 = vsub.f32 %v173, %v190
  %v192 = vmul.f32 %v187, %v187
  %v193 = vsub.f32 1.0, %v192
  %v194 = vmul.f32 %v178, %v193
  %v195 = vmul.f32 %v189, %v131
  %v196 = vsub.f32 %v155, %v195
  %v197 = vmul.f32 %v191, %v107
  %v198 = vsub.f32 %v196, %v197
  %v199 = vmul.f32 %v187, %v83
  %v200 = vsub.f32 %v198, %v199
  %v201 = vand.u32 2147483647, %v194
  %vm202 = vcmp.gt.f32.partialorder %v201, 1e-12
  %v203 = vsel %vm202, %v194, 1e-12
  %v204 = vrcp.pop %v203
  %v205 = vmul.f32 %v200, %v204
  %v206 = vmul.f32 %v205, %v187
  %v207 = vsub.f32 %v189, %v206
  %v208 = vmul.f32 %v205, %v191
  %v209 = vsub.f32 %v191, %v208
  %v210 = vmul.f32 %v205, %v189
  %v211 = vsub.f32 %v187, %v210
  %v212 = vmul.f32 %v207, %v39
  %v213 = vmul.f32 %v209, %v39
  %v215 = vrot.slane %v213, 7
  %v217 = vadd.f32 %v212, %v215
  %v218 = vmul.f32 %v211, %v39
  %v220 = vrot.slane %v218, 6
  %v222 = vadd.f32 %v217, %v220
  %v223 = vmul.f32 %v205, %v39
  %v225 = vrot.slane %v223, 5
  %v227 = vadd.f32 %v222, %v225
  %v228 = vadd.f32 %v9, %v227
  %v229 = vadd.f32 %v228, %v37
  %v230 = vmul.f32 %v207, %v227
  %v231 = vadd.f32 %v230, %v213
  %v232 = vrot.slane %v218, 7
  %v234 = vadd.f32 %v231, %v232
  %v235 = vrot.slane %v223, 6
  %v237 = vadd.f32 %v234, %v235
  %v238 = vadd.f32 %v229, %v237
  %v239 = vadd.f32 %v238, %v37
  %v240 = vmul.f32 %v207, %v237
  %v241 = vmul.f32 %v209, %v227
  %v242 = vadd.f32 %v240, %v241
  %v243 = vadd.f32 %v242, %v218
  %v244 = vrot.slane %v223, 7
  %v246 = vadd.f32 %v243, %v244
  %v247 = vadd.f32 %v239, %v246
  %v248 = vadd.f32 %v247, %v37
  %v249 = vmul.f32 %v207, %v246
  %v250 = vmul.f32 %v209, %v237
  %v251 = vadd.f32 %v249, %v250
  %v252 = vmul.f32 %v211, %v227
  %v253 = vadd.f32 %v251, %v252
  %v254 = vadd.f32 %v253, %v223
  %v255 = vadd.f32 %v248, %v254
  %v256 = vadd.f32 %v255, %v37
  %v257 = vmul.f32 %v207, %v254
  %v258 = vmul.f32 %v209, %v246
  %v259 = vadd.f32 %v257, %v258
  %v260 = vmul.f32 %v211, %v237
  %v261 = vadd.f32 %v259, %v260
  %v262 = vmul.f32 %v205, %v227
  %v263 = vadd.f32 %v261, %v262
  %v264 = vadd.f32 %v256, %v263
  %v265 = vadd.f32 %v264, %v37
  %v266 = vmul.f32 %v207, %v263
  %v267 = vmul.f32 %v209, %v254
  %v268 = vadd.f32 %v266, %v267
  %v269 = vmul.f32 %v211, %v246
  %v270 = vadd.f32 %v268, %v269
  %v271 = vmul.f32 %v205, %v237
  %v272 = vadd.f32 %v270, %v271
  %v273 = vadd.f32 %v265, %v272
  %v274 = vadd.f32 %v273, %v37
  %v275 = vmul.f32 %v207, %v272
  %v276 = vmul.f32 %v209, %v263
  %v277 = vadd.f32 %v275, %v276
  %v278 = vmul.f32 %v211, %v254
  %v279 = vadd.f32 %v277, %v278
  %v280 = vmul.f32 %v205, %v246
  %v281 = vadd.f32 %v279, %v280
  %v282 = vadd.f32 %v274, %v281
  %v283 = vadd.f32 %v282, %v37
  %v284 = vmul.f32 %v207, %v281
  %v285 = vmul.f32 %v209, %v272
  %v286 = vadd.f32 %v284, %v285
  %v287 = vmul.f32 %v211, %v263
  %v288 = vadd.f32 %v286, %v287
  %v289 = vmul.f32 %v205, %v254
  %v290 = vadd.f32 %v288, %v289
  %v291 = vadd.f32 %v283, %v290
  %v292 = vadd.f32 %v291, %v37
  %v294 = vrot.slane %v229, 7
  %v297 = vrot.slane %v239, 6
  %v300 = vrot.slane %v248, 5
  %v303 = vrot.slane %v256, 4
  %v306 = vrot.slane %v265, 3
  %v309 = vrot.slane %v274, 2
  %v312 = vrot.slane %v283, 1
  %v314 = vsel %vm12, %v294, %v297
  %vm315 = vcmask 1041408
  %v316 = vsel %vm315, %v314, %v300
  %v317 = vsel %vm146, %v316, %v303
  %v318 = vsel %vm122, %v317, %v306
  %v319 = vsel %vm98, %v318, %v309
  %v320 = vsel %vm74, %v319, %v312
  %v321 = vsel %vm22, %v320, %v292
  %322 = vst [vmem:[%s1] sm:$0xff] %v321
  // Predicated region
  $region6: #{arima_forecast.1} parent=0 // pred_check
    _
  $region7: #{arima_forecast.1} parent=0 // pred_check_branch
    %324 = sbr.rel (0) target = $region9
  $region8: #{arima_forecast.1} parent=0 // pred_region
    _
  $region9: #{arima_forecast.1} parent=0 // pred_fallthru
    _
  // Predicated region
  $region10: #{arima_forecast.1} parent=0 // pred_check
    _
  $region11: #{arima_forecast.1} parent=0 // pred_check_branch
    %326 = sbr.rel (0) target = $region13
  $region12: #{arima_forecast.1} parent=0 // pred_region
    _
  $region13: #{arima_forecast.1} parent=0 // pred_fallthru
    _

</llo_original>
